<compile_context>
chip_gen: v7x
topology: tpu7x:2x2x1
jax: 0.10.0
libtpu: 0.0.40
codegen_flags: <defaults>
</compile_context>

<pallas_src>
import jax
import jax.numpy as jnp
from jax.experimental import pallas as pl
from jax.experimental.pallas import tpu as pltpu


def _round_up(n: int, m: int) -> int:
    return ((n + m - 1) // m) * m


def _mlp_kernel(x_ref, w1_ref, b1_ref, w2_ref, b2_ref, out_ref):
    x = x_ref[...]                          # (TB, F)   f32
    w1 = w1_ref[...]                        # (F, Hp)   f32
    n_feature = x.shape[1]
    n_out = out_ref.shape[1]                # true (unpadded) output width

    if n_feature <= 8:
        # ---- Layer 1 on the VPU: a K=F(=2) matmul would pay full MXU
        # push/drain latency for 2 accumulation steps. Bias is the accumulator
        # init, so there is no separate broadcast+add pass per tile.
        h = b1_ref[...]                     # (1, Hp) -> broadcasts on first add
        for f in range(n_feature):
            h = h + x[:, f:f + 1] * w1[f:f + 1, :]      # (TB,1)*(1,Hp) -> (TB,Hp)
    else:
        # General path: keep the first layer on the MXU.
        h = jnp.dot(x, w1, preferred_element_type=jnp.float32) + b1_ref[...]

    h = jnp.maximum(h, 0.0)                 # ReLU, (TB, Hp)

    # ---- Layer 2 on the MXU: K = Hp (>=128), N = Op (>=128) -> full-width MXU.
    # If the wrapper stored w2 in bf16 (non-toy H), feed bf16 LHS too; the
    # accumulation stays f32.
    h2 = h.astype(w2_ref.dtype)
    y = jnp.dot(h2, w2_ref[...], preferred_element_type=jnp.float32) + b2_ref[...]

    # Store only the true O columns: far cheaper (masked vst) than writing the
    # 128-padded slab to HBM.
    out_ref[...] = y[:, :n_out].astype(out_ref.dtype)


def net_forward(x, w1, b1, w2, b2, *, tb=2048, matmul_dtype=None,
                vmem_limit_bytes=32 * 1024 * 1024):
    """x: (B, F); w1: (F, H); b1: (H,); w2: (H, O); b2: (O,)."""
    B, F = x.shape
    H = w1.shape[1]
    O = w2.shape[1]

    # Lane-dense padding of the hidden/output widths for the in-kernel matmul
    # (zero pad => exact result). Only the weights are padded; the HBM output
    # stays (B, O).
    Hp = _round_up(H, 128)
    Op = _round_up(O, 128)

    # bf16 MXU inputs for the second matmul once H is non-toy (roughly doubles
    # MXU throughput on v5e/v6e/v7x and halves the resident w2 footprint).
    if matmul_dtype is None:
        matmul_dtype = jnp.bfloat16 if H >= 512 else jnp.float32

    w1p = jnp.pad(w1, ((0, 0), (0, Hp - H)))
    b1p = jnp.pad(b1, (0, Hp - H)).reshape(1, Hp)
    w2p = jnp.pad(w2, ((0, Hp - H), (0, Op - O))).astype(matmul_dtype)
    b2p = jnp.pad(b2, (0, Op - O)).reshape(1, Op)

    # TODO(synk): if Hp*Op*itemsize (+ double-buffered x/out tiles) approaches
    # ~half the scoped VMEM (v7x: 32 MiB default), add a K/N grid axis marked
    # "arbitrary" and tile w2 instead of keeping it VMEM-resident.

    # Batch tiling. TB stays a multiple of 8 (sublane); no padding of x — the
    # grid uses cdiv and Pallas masks the partial last block (out-of-bounds
    # output rows are never written back).
    TB = min(_round_up(tb, 8), _round_up(B, 8))
    # v7x: make sure a non-toy batch produces >=2 grid steps so the "parallel"
    # axis can be sharded across both TensorCores (harmless on v5e/v6e).
    if B >= 1024 and pl.cdiv(B, TB) < 2:
        TB = _round_up(pl.cdiv(B, 2), 8)
    grid = (pl.cdiv(B, TB),)

    out = pl.pallas_call(
        _mlp_kernel,
        out_shape=jax.ShapeDtypeStruct((B, O), jnp.float32),
        grid=grid,
        in_specs=[
            pl.BlockSpec((TB, F), lambda i: (i, 0)),    # batch tile of x
            pl.BlockSpec((F, Hp), lambda i: (0, 0)),    # weights: VMEM-resident
            pl.BlockSpec((1, Hp), lambda i: (0, 0)),
            pl.BlockSpec((Hp, Op), lambda i: (0, 0)),
            pl.BlockSpec((1, Op), lambda i: (0, 0)),
        ],
        out_specs=pl.BlockSpec((TB, O), lambda i: (i, 0)),   # unpadded output
        compiler_params=pltpu.CompilerParams(
            dimension_semantics=("parallel",),          # independent batch tiles
            vmem_limit_bytes=vmem_limit_bytes,
        ),
    )(x, w1p, b1p, w2p, b2p)

    return out


def init_params(key, n_feature, n_hidden, n_output):
    """Deterministic init mimicking nn.Linear defaults: U(-1/sqrt(fan_in), 1/sqrt(fan_in)).
    Weights stored as (in, out), i.e. transposed relative to PyTorch's (out, in)."""
    k1, k2, k3, k4 = jax.random.split(key, 4)
    bound1 = 1.0 / jnp.sqrt(n_feature)
    bound2 = 1.0 / jnp.sqrt(n_hidden)
    w1 = jax.random.uniform(k1, (n_feature, n_hidden), jnp.float32, -bound1, bound1)
    b1 = jax.random.uniform(k2, (n_hidden,), jnp.float32, -bound1, bound1)
    w2 = jax.random.uniform(k3, (n_hidden, n_output), jnp.float32, -bound2, bound2)
    b2 = jax.random.uniform(k4, (n_output,), jnp.float32, -bound2, bound2)
    return w1, b1, w2, b2


if __name__ == "__main__":
    # Shapes consistent with the script: 2*data_size = 100 two-feature points
    # (two Gaussian clusters), Net(n_feature=2, n_hidden=32, n_output=2).
    data_size, n_feature, n_hidden, n_output = 50, 2, 32, 2
    batch = 2 * data_size

    key = jax.random.PRNGKey(0)
    kx1, kx2, kp = jax.random.split(key, 3)

    x1 = jax.random.normal(kx1, (data_size, n_feature), jnp.float32) + 2.0
    x2 = jax.random.normal(kx2, (data_size, n_feature), jnp.float32) - 2.0
    x = jnp.concatenate([x1, x2], axis=0)                    # (100, 2)

    w1, b1, w2, b2 = init_params(kp, n_feature, n_hidden, n_output)

    # Toy size: default tb >= B -> single grid step (no forced multi-step overhead).
    out = net_forward(x, w1, b1, w2, b2)
    jax.block_until_ready(out)

    # Pure-JAX reference check (full-precision matmuls; toy H keeps the f32 MXU path).
    hi = jnp.maximum(
        jnp.dot(x, w1, precision=jax.lax.Precision.HIGHEST) + b1, 0.0)
    ref = jnp.dot(hi, w2, precision=jax.lax.Precision.HIGHEST) + b2
    assert out.shape == (batch, n_output)
    assert jnp.allclose(out, ref, atol=1e-3, rtol=1e-3)

    print("KERNEL_OK")
</pallas_src>

<mosaic_0001>
module attributes {stable_mosaic.version = 11 : i64} {
  func.func @_mlp_kernel(%arg0: i32, %arg1: memref<104x2xf32, #tpu.memory_space<vmem>>, %arg2: memref<2x128xf32, #tpu.memory_space<vmem>>, %arg3: memref<1x128xf32, #tpu.memory_space<vmem>>, %arg4: memref<128x128xf32, #tpu.memory_space<vmem>>, %arg5: memref<1x128xf32, #tpu.memory_space<vmem>>, %arg6: memref<104x2xf32, #tpu.memory_space<vmem>>) attributes {dimension_semantics = [#tpu.dimension_semantics<parallel>], iteration_bounds = array<i64: 1>, scalar_prefetch = 0 : i64, scratch_operands = 0 : i64, tpu.core_type = #tpu.core_type<tc>, window_params = [{transform_indices = @transform_0, window_bounds = array<i64: 104, 2>}, {pipeline_mode = #tpu.pipeline_mode<synchronous>, transform_indices = @transform_1, window_bounds = array<i64: 2, 128>}, {pipeline_mode = #tpu.pipeline_mode<synchronous>, transform_indices = @transform_2, window_bounds = array<i64: 1, 128>}, {pipeline_mode = #tpu.pipeline_mode<synchronous>, transform_indices = @transform_3, window_bounds = array<i64: 128, 128>}, {pipeline_mode = #tpu.pipeline_mode<synchronous>, transform_indices = @transform_4, window_bounds = array<i64: 1, 128>}, {transform_indices = @transform_5, window_bounds = array<i64: 104, 2>}]} {
    %c0 = arith.constant 0 : index
    %c0_0 = arith.constant 0 : index
    %0 = vector.load %arg1[%c0, %c0_0] : memref<104x2xf32, #tpu.memory_space<vmem>>, vector<104x2xf32>
    %c0_1 = arith.constant 0 : index
    %c0_2 = arith.constant 0 : index
    %1 = vector.load %arg2[%c0_1, %c0_2] : memref<2x128xf32, #tpu.memory_space<vmem>>, vector<2x128xf32>
    %c0_3 = arith.constant 0 : index
    %c0_4 = arith.constant 0 : index
    %2 = vector.load %arg3[%c0_3, %c0_4] : memref<1x128xf32, #tpu.memory_space<vmem>>, vector<1x128xf32>
    %3 = vector.extract_strided_slice %0 {offsets = [0, 0], sizes = [104, 1], strides = [1, 1]} : vector<104x2xf32> to vector<104x1xf32>
    %4 = vector.extract_strided_slice %1 {offsets = [0, 0], sizes = [1, 128], strides = [1, 1]} : vector<2x128xf32> to vector<1x128xf32>
    %5 = vector.broadcast %3 : vector<104x1xf32> to vector<104x128xf32>
    %6 = vector.broadcast %4 : vector<1x128xf32> to vector<104x128xf32>
    %7 = arith.mulf %5, %6 : vector<104x128xf32>
    %8 = vector.broadcast %2 : vector<1x128xf32> to vector<104x128xf32>
    %9 = arith.addf %8, %7 : vector<104x128xf32>
    %10 = vector.extract_strided_slice %0 {offsets = [0, 1], sizes = [104, 1], strides = [1, 1]} : vector<104x2xf32> to vector<104x1xf32>
    %11 = vector.extract_strided_slice %1 {offsets = [1, 0], sizes = [1, 128], strides = [1, 1]} : vector<2x128xf32> to vector<1x128xf32>
    %12 = vector.broadcast %10 : vector<104x1xf32> to vector<104x128xf32>
    %13 = vector.broadcast %11 : vector<1x128xf32> to vector<104x128xf32>
    %14 = arith.mulf %12, %13 : vector<104x128xf32>
    %15 = arith.addf %9, %14 : vector<104x128xf32>
    %cst = arith.constant 0.000000e+00 : f32
    %16 = vector.broadcast %cst : f32 to vector<104x128xf32>
    %17 = arith.maximumf %15, %16 : vector<104x128xf32>
    %c0_5 = arith.constant 0 : index
    %c0_6 = arith.constant 0 : index
    %18 = vector.load %arg4[%c0_5, %c0_6] : memref<128x128xf32, #tpu.memory_space<vmem>>, vector<128x128xf32>
    %cst_7 = arith.constant dense<0.000000e+00> : vector<104x128xf32>
    %19 = tpu.matmul %17, %18, %cst_7 {dimension_numbers = #tpu.dot_dimension_numbers<[1], [0], [0], [1], [0, 0, 1, 1], [], []>} : vector<104x128xf32>, vector<128x128xf32>, vector<104x128xf32> -> vector<104x128xf32>
    %c0_8 = arith.constant 0 : index
    %c0_9 = arith.constant 0 : index
    %20 = vector.load %arg5[%c0_8, %c0_9] : memref<1x128xf32, #tpu.memory_space<vmem>>, vector<1x128xf32>
    %21 = vector.broadcast %20 : vector<1x128xf32> to vector<104x128xf32>
    %22 = arith.addf %19, %21 : vector<104x128xf32>
    %23 = vector.extract_strided_slice %22 {offsets = [0, 0], sizes = [104, 2], strides = [1, 1]} : vector<104x128xf32> to vector<104x2xf32>
    %c0_10 = arith.constant 0 : index
    %c0_11 = arith.constant 0 : index
    %24 = vector.load %arg6[%c0_10, %c0_11] : memref<104x2xf32, #tpu.memory_space<vmem>>, vector<104x2xf32>
    tpu.vector_store %arg6[%c0_10, %c0_11], %23 {strides = array<i32>} : memref<104x2xf32, #tpu.memory_space<vmem>>, vector<104x2xf32>,
    return
  }
  func.func @transform_0(%arg0: i32) -> (i32, i32) {
    %c0_i32 = arith.constant 0 : i32
    %c0_i32_0 = arith.constant 0 : i32
    return %arg0, %c0_i32 : i32, i32
  }
  func.func @transform_1(%arg0: i32) -> (i32, i32) {
    %c0_i32 = arith.constant 0 : i32
    %c0_i32_0 = arith.constant 0 : i32
    %c0_i32_1 = arith.constant 0 : i32
    return %c0_i32, %c0_i32_0 : i32, i32
  }
  func.func @transform_2(%arg0: i32) -> (i32, i32) {
    %c0_i32 = arith.constant 0 : i32
    %c0_i32_0 = arith.constant 0 : i32
    %c0_i32_1 = arith.constant 0 : i32
    return %c0_i32, %c0_i32_0 : i32, i32
  }
  func.func @transform_3(%arg0: i32) -> (i32, i32) {
    %c0_i32 = arith.constant 0 : i32
    %c0_i32_0 = arith.constant 0 : i32
    %c0_i32_1 = arith.constant 0 : i32
    return %c0_i32, %c0_i32_0 : i32, i32
  }
  func.func @transform_4(%arg0: i32) -> (i32, i32) {
    %c0_i32 = arith.constant 0 : i32
    %c0_i32_0 = arith.constant 0 : i32
    %c0_i32_1 = arith.constant 0 : i32
    return %c0_i32, %c0_i32_0 : i32, i32
  }
  func.func @transform_5(%arg0: i32) -> (i32, i32) {
    %c0_i32 = arith.constant 0 : i32
    %c0_i32_0 = arith.constant 0 : i32
    return %arg0, %c0_i32 : i32, i32
  }
}

</mosaic_0001>

<llo_original>
// kernel: tpu_custom_call.1
$region0: #{tpu_custom_call.1}
  #allocation0 [shape = 'u32[]', space=smem, size = 0x4, offset = 0x4, fixed_abs, tag = 'smem constant byte address 0x4 - core index']
  #allocation1 [shape = 'u32[144,128]{1,0:T(1,128)}', space=vmem, size = 0x12000, scoped, tag = 'internal scratch']
  %s0 = inlined_call_operand.vmem [shape: f32[100,2], index: 0, kind: input, shape index: {}]
  %s1 = inlined_call_operand.vmem [shape: f32[2,128], index: 1, kind: input, shape index: {}]
  %s2 = inlined_call_operand.vmem [shape: f32[1,128], index: 2, kind: input, shape index: {}]
  %s3 = inlined_call_operand.hbm [shape: f32[128,128], index: 3, kind: input, shape index: {}]
  %s4 = inlined_call_operand.vmem [shape: f32[1,128], index: 4, kind: input, shape index: {}]
  %s5 = inlined_call_operand.vmem [shape: f32[100,2], index: 5, kind: output, shape index: {}]
  %s6 = sld [smem:[#allocation0]]
  $region34: #{tpu_custom_call.1} parent=0
    _
  %s8 = ssub.s32 1, %s6
  %s9 = scalar_select 0, %s8, %s6
  $region1: #{tpu_custom_call.1} parent=0
    #allocation2 [shape = 'u8[65536]{0}', space=vmem, size = 0x10000, scoped, tag = 'input window, operand 3, single buffered']
    #allocation3 [shape = 's32[1]{0}', space=sflag, size = 0x4, scoped, tag = 'scoped memory for tpu_custom_call.1']
    %10 = vsyncpa [#allocation3], 0
    // Predicated region
    $region2: #{tpu_custom_call.1} parent=1 // pred_check
      _
    $region3: #{tpu_custom_call.1} parent=1 // pred_check_branch
      %12 = sbr.rel (0) target = $region5
    $region4: #{tpu_custom_call.1} parent=1 // pred_region
      _
    $region5: #{tpu_custom_call.1} parent=1 // pred_fallthru
      _
    // Predicated region
    $region6: #{tpu_custom_call.1} parent=1 // pred_check
      _
    $region7: #{tpu_custom_call.1} parent=1 // pred_check_branch
      %14 = sbr.rel (0) target = $region9
    $region8: #{tpu_custom_call.1} parent=1 // pred_region
      _
    $region9: #{tpu_custom_call.1} parent=1 // pred_fallthru
      _
    // Predicated region
    $region10: #{tpu_custom_call.1} parent=1 // pred_check
      _
    $region11: #{tpu_custom_call.1} parent=1 // pred_check_branch
      %16 = sbr.rel (0) target = $region13
    $region12: #{tpu_custom_call.1} parent=1 // pred_region
      _
    $region13: #{tpu_custom_call.1} parent=1 // pred_fallthru
      _
    // Predicated region
    $region14: #{tpu_custom_call.1} parent=1 // pred_check
      _
    $region15: #{tpu_custom_call.1} parent=1 // pred_check_branch
      %18 = sbr.rel (0) target = $region17
    $region16: #{tpu_custom_call.1} parent=1 // pred_region
      %s20 = ssub.s32 2048, 2048
      %21 = vsyncadd [#allocation3], %s20
      %s22 = sshll.u32 [#allocation2], 4
      %s23 = int_to_ptr.vmem [resolvable:$true] %s22
      %28 = dma.hbm_to_vmem [thread:$0]  %s3, 2048, %s23, [#allocation3], 128, 128, 8
    $region17: #{tpu_custom_call.1} parent=1 // pred_fallthru
      _
    // Predicated region
    $region18: #{tpu_custom_call.1} parent=1 // pred_check
      _
    $region19: #{tpu_custom_call.1} parent=1 // pred_check_branch
      %30 = sbr.rel (0) target = $region21
    $region20: #{tpu_custom_call.1} parent=1 // pred_region
      _
    $region21: #{tpu_custom_call.1} parent=1 // pred_fallthru
      _
    // Predicated region
    $region22: #{tpu_custom_call.1} parent=1 // pred_check
      _
    $region23: #{tpu_custom_call.1} parent=1 // pred_check_branch
      %32 = sbr.rel (0) target = $region25
    $region24: #{tpu_custom_call.1} parent=1 // pred_region
      %33 = dma.done [#allocation3], 2048
    $region25: #{tpu_custom_call.1} parent=1 // pred_fallthru
      _
    %v34 = vld [vmem:[%s0] sm:$0xff]
    %v35 = vld [vmem:[%s0 + $0x8] sm:$0xff]
    %v36 = vld [vmem:[%s0 + $0x10] sm:$0xff]
    %v37 = vld [vmem:[%s0 + $0x18] sm:$0xff]
    %v38 = vld [vmem:[%s0 + $0x20] sm:$0xff]
    %v39 = vld [vmem:[%s0 + $0x28] sm:$0xff]
    %v40 = vld [vmem:[%s0 + $0x30] sm:$0xff]
    %v41 = vld [vmem:[%s0 + $0x38] sm:$0xff]
    %v42 = vld [vmem:[%s0 + $0x40] sm:$0xff]
    %v43 = vld [vmem:[%s0 + $0x48] sm:$0xff]
    %v44 = vld [vmem:[%s0 + $0x50] sm:$0xff]
    %v45 = vld [vmem:[%s0 + $0x58] sm:$0xff]
    %v46 = vld [vmem:[%s0 + $0x60] sm:$0xff]
    %v47 = vld [vmem:[%s1] sm:$0x3]
    %v48 = vld [vmem:[%s2] sm:$0x1]
    %50 = vset.pattern.permute.xlu0 0
    %51 = vperm.xlu0 %50, %v34
    %v52 = vpop.permute.xlu0 %51
    %55 = vset.pattern.permute.xlu0 0
    %56 = vperm.xlu0 %55, %v35
    %v57 = vpop.permute.xlu0 %56
    %60 = vset.pattern.permute.xlu0 0
    %61 = vperm.xlu0 %60, %v36
    %v62 = vpop.permute.xlu0 %61
    %65 = vset.pattern.permute.xlu0 0
    %66 = vperm.xlu0 %65, %v37
    %v67 = vpop.permute.xlu0 %66
    %70 = vset.pattern.permute.xlu0 0
    %71 = vperm.xlu0 %70, %v38
    %v72 = vpop.permute.xlu0 %71
    %75 = vset.pattern.permute.xlu0 0
    %76 = vperm.xlu0 %75, %v39
    %v77 = vpop.permute.xlu0 %76
    %80 = vset.pattern.permute.xlu0 0
    %81 = vperm.xlu0 %80, %v40
    %v82 = vpop.permute.xlu0 %81
    %85 = vset.pattern.permute.xlu0 0
    %86 = vperm.xlu0 %85, %v41
    %v87 = vpop.permute.xlu0 %86
    %90 = vset.pattern.permute.xlu0 0
    %91 = vperm.xlu0 %90, %v42
    %v92 = vpop.permute.xlu0 %91
    %95 = vset.pattern.permute.xlu0 0
    %96 = vperm.xlu0 %95, %v43
    %v97 = vpop.permute.xlu0 %96
    %100 = vset.pattern.permute.xlu0 0
    %101 = vperm.xlu0 %100, %v44
    %v102 = vpop.permute.xlu0 %101
    %105 = vset.pattern.permute.xlu0 0
    %106 = vperm.xlu0 %105, %v45
    %v107 = vpop.permute.xlu0 %106
    %110 = vset.pattern.permute.xlu0 0
    %111 = vperm.xlu0 %110, %v46
    %v112 = vpop.permute.xlu0 %111
    %v114 = vlaneseq
    %v115 = vshrl.u32 %v114, 7
    %v116 = vsub.s32 0, %v115
    %v117 = vrot.slane %v47, %v116
    %v118 = vmul.f32 %v52, %v117
    %v119 = vmul.f32 %v57, %v117
    %v120 = vmul.f32 %v62, %v117
    %v121 = vmul.f32 %v67, %v117
    %v122 = vmul.f32 %v72, %v117
    %v123 = vmul.f32 %v77, %v117
    %v124 = vmul.f32 %v82, %v117
    %v125 = vmul.f32 %v87, %v117
    %v126 = vmul.f32 %v92, %v117
    %v127 = vmul.f32 %v97, %v117
    %v128 = vmul.f32 %v102, %v117
    %v129 = vmul.f32 %v107, %v117
    %v130 = vmul.f32 %v112, %v117
    %v132 = vlaneseq
    %v133 = vshrl.u32 %v132, 7
    %v134 = vsub.s32 0, %v133
    %v135 = vrot.slane %v48, %v134
    %v137 = vadd.f32 %v135, %v118
    %v138 = vadd.f32 %v135, %v119
    %v139 = vadd.f32 %v135, %v120
    %v140 = vadd.f32 %v135, %v121
    %v141 = vadd.f32 %v135, %v122
    %v142 = vadd.f32 %v135, %v123
    %v143 = vadd.f32 %v135, %v124
    %v144 = vadd.f32 %v135, %v125
    %v145 = vadd.f32 %v135, %v126
    %v146 = vadd.f32 %v135, %v127
    %v147 = vadd.f32 %v135, %v128
    %v148 = vadd.f32 %v135, %v129
    %v149 = vadd.f32 %v135, %v130
    %150 = vset.pattern.permute.xlu0 1
    %151 = vperm.xlu0 %150, %v34
    %v152 = vpop.permute.xlu0 %151
    %154 = vset.pattern.permute.xlu0 1
    %155 = vperm.xlu0 %154, %v35
    %v156 = vpop.permute.xlu0 %155
    %158 = vset.pattern.permute.xlu0 1
    %159 = vperm.xlu0 %158, %v36
    %v160 = vpop.permute.xlu0 %159
    %162 = vset.pattern.permute.xlu0 1
    %163 = vperm.xlu0 %162, %v37
    %v164 = vpop.permute.xlu0 %163
    %166 = vset.pattern.permute.xlu0 1
    %167 = vperm.xlu0 %166, %v38
    %v168 = vpop.permute.xlu0 %167
    %170 = vset.pattern.permute.xlu0 1
    %171 = vperm.xlu0 %170, %v39
    %v172 = vpop.permute.xlu0 %171
    %174 = vset.pattern.permute.xlu0 1
    %175 = vperm.xlu0 %174, %v40
    %v176 = vpop.permute.xlu0 %175
    %178 = vset.pattern.permute.xlu0 1
    %179 = vperm.xlu0 %178, %v41
    %v180 = vpop.permute.xlu0 %179
    %182 = vset.pattern.permute.xlu0 1
    %183 = vperm.xlu0 %182, %v42
    %v184 = vpop.permute.xlu0 %183
    %186 = vset.pattern.permute.xlu0 1
    %187 = vperm.xlu0 %186, %v43
    %v188 = vpop.permute.xlu0 %187
    %190 = vset.pattern.permute.xlu0 1
    %191 = vperm.xlu0 %190, %v44
    %v192 = vpop.permute.xlu0 %191
    %194 = vset.pattern.permute.xlu0 1
    %195 = vperm.xlu0 %194, %v45
    %v196 = vpop.permute.xlu0 %195
    %198 = vset.pattern.permute.xlu0 1
    %199 = vperm.xlu0 %198, %v46
    %v200 = vpop.permute.xlu0 %199
    %v202 = vlaneseq
    %v203 = vshrl.u32 %v202, 7
    %v204 = vsub.s32 1, %v203
    %v205 = vrot.slane %v47, %v204
    %v206 = vmul.f32 %v152, %v205
    %v207 = vmul.f32 %v156, %v205
    %v208 = vmul.f32 %v160, %v205
    %v209 = vmul.f32 %v164, %v205
    %v210 = vmul.f32 %v168, %v205
    %v211 = vmul.f32 %v172, %v205
    %v212 = vmul.f32 %v176, %v205
    %v213 = vmul.f32 %v180, %v205
    %v214 = vmul.f32 %v184, %v205
    %v215 = vmul.f32 %v188, %v205
    %v216 = vmul.f32 %v192, %v205
    %v217 = vmul.f32 %v196, %v205
    %v218 = vmul.f32 %v200, %v205
    %v219 = vadd.f32 %v137, %v206
    %v220 = vadd.f32 %v138, %v207
    %v221 = vadd.f32 %v139, %v208
    %v222 = vadd.f32 %v140, %v209
    %v223 = vadd.f32 %v141, %v210
    %v224 = vadd.f32 %v142, %v211
    %v225 = vadd.f32 %v143, %v212
    %v226 = vadd.f32 %v144, %v213
    %v227 = vadd.f32 %v145, %v214
    %v228 = vadd.f32 %v146, %v215
    %v229 = vadd.f32 %v147, %v216
    %v230 = vadd.f32 %v148, %v217
    %v231 = vadd.f32 %v149, %v218
    %v232 = vmax.f32 %v219, 0.0
    %v233 = vmax.f32 %v220, 0.0
    %v234 = vmax.f32 %v221, 0.0
    %v235 = vmax.f32 %v222, 0.0
    %v236 = vmax.f32 %v223, 0.0
    %v237 = vmax.f32 %v224, 0.0
    %v238 = vmax.f32 %v225, 0.0
    %v239 = vmax.f32 %v226, 0.0
    %v240 = vmax.f32 %v227, 0.0
    %v241 = vmax.f32 %v228, 0.0
    %v242 = vmax.f32 %v229, 0.0
    %v243 = vmax.f32 %v230, 0.0
    %v244 = vmax.f32 %v231, 0.0
    %v245 = vld [vmem:[#allocation2] sm:$0xff]
    %v246 = vld [vmem:[#allocation2 + $0x8] sm:$0xff]
    %v247 = vld [vmem:[#allocation2 + $0x10] sm:$0xff]
    %v248 = vld [vmem:[#allocation2 + $0x18] sm:$0xff]
    %v249 = vld [vmem:[#allocation2 + $0x20] sm:$0xff]
    %v250 = vld [vmem:[#allocation2 + $0x28] sm:$0xff]
    %v251 = vld [vmem:[#allocation2 + $0x30] sm:$0xff]
    %v252 = vld [vmem:[#allocation2 + $0x38] sm:$0xff]
    %v253 = vld [vmem:[#allocation2 + $0x40] sm:$0xff]
    %v254 = vld [vmem:[#allocation2 + $0x48] sm:$0xff]
    %v255 = vld [vmem:[#allocation2 + $0x50] sm:$0xff]
    %v256 = vld [vmem:[#allocation2 + $0x58] sm:$0xff]
    %v257 = vld [vmem:[#allocation2 + $0x60] sm:$0xff]
    %v258 = vld [vmem:[#allocation2 + $0x68] sm:$0xff]
    %v259 = vld [vmem:[#allocation2 + $0x70] sm:$0xff]
    %v260 = vld [vmem:[#allocation2 + $0x78] sm:$0xff]
    %v261 = vld [vmem:[%s4] sm:$0x1]
    %v263 = vlaneseq
    %v264 = vshrl.u32 %v263, 7
    %v265 = vsub.s32 0, %v264
    %v266 = vrot.slane %v261, %v265
    %268 = vmatprep.subr.mxu0 0.0
    %269 = vmatpush1.msra.mxu0 %v245
    %270 = vmatprep.subr.mxu0 0.0
    %271 = vmatpush1.msra.mxu0 %v246
    %272 = vmatprep.subr.mxu0 0.0
    %273 = vmatpush1.msra.mxu0 %v247
    %274 = vmatprep.subr.mxu0 0.0
    %275 = vmatpush1.msra.mxu0 %v248
    %276 = vmatprep.subr.mxu0 0.0
    %277 = vmatpush1.msra.mxu0 %v249
    %278 = vmatprep.subr.mxu0 0.0
    %279 = vmatpush1.msra.mxu0 %v250
    %280 = vmatprep.subr.mxu0 0.0
    %281 = vmatpush1.msra.mxu0 %v251
    %282 = vmatprep.subr.mxu0 0.0
    %283 = vmatpush1.msra.mxu0 %v252
    %284 = vmatprep.subr.mxu0 0.0
    %285 = vmatpush1.msra.mxu0 %v253
    %286 = vmatprep.subr.mxu0 0.0
    %287 = vmatpush1.msra.mxu0 %v254
    %288 = vmatprep.subr.mxu0 0.0
    %289 = vmatpush1.msra.mxu0 %v255
    %290 = vmatprep.subr.mxu0 0.0
    %291 = vmatpush1.msra.mxu0 %v256
    %292 = vmatprep.subr.mxu0 0.0
    %293 = vmatpush1.msra.mxu0 %v257
    %294 = vmatprep.subr.mxu0 0.0
    %295 = vmatpush1.msra.mxu0 %v258
    %296 = vmatprep.subr.mxu0 0.0
    %297 = vmatpush1.msra.mxu0 %v259
    %298 = vmatprep.subr.mxu0 0.0
    %299 = vmatpush1.msra.mxu0 %v260
    %300 = vmatprep.subr.mxu0 0.0
    %301 = vmatpush1.msra.mxu0 0.0
    %302 = vmatprep.subr.mxu0 0.0
    %303 = vmatpush1.msra.mxu0 0.0
    %304 = vmatprep.subr.mxu0 0.0
    %305 = vmatpush1.msra.mxu0 0.0
    %306 = vmatprep.subr.mxu0 0.0
    %307 = vmatpush1.msra.mxu0 0.0
    %308 = vmatprep.subr.mxu0 0.0
    %309 = vmatpush1.msra.mxu0 0.0
    %310 = vmatprep.subr.mxu0 0.0
    %311 = vmatpush1.msra.mxu0 0.0
    %312 = vmatprep.subr.mxu0 0.0
    %313 = vmatpush1.msra.mxu0 0.0
    %314 = vmatprep.subr.mxu0 0.0
    %315 = vmatpush1.msra.mxu0 0.0
    %316 = vmatprep.subr.mxu0 0.0
    %317 = vmatpush1.msra.mxu0 0.0
    %318 = vmatprep.subr.mxu0 0.0
    %319 = vmatpush1.msra.mxu0 0.0
    %320 = vmatprep.subr.mxu0 0.0
    %321 = vmatpush1.msra.mxu0 0.0
    %322 = vmatprep.subr.mxu0 0.0
    %323 = vmatpush1.msra.mxu0 0.0
    %324 = vmatprep.subr.mxu0 0.0
    %325 = vmatpush1.msra.mxu0 0.0
    %326 = vmatprep.subr.mxu0 0.0
    %327 = vmatpush1.msra.mxu0 0.0
    %328 = vmatprep.subr.mxu0 0.0
    %329 = vmatpush1.msra.mxu0 0.0
    %330 = vmatprep.subr.mxu0 0.0
    %331 = vmatpush1.msra.mxu0 0.0
    %332 = vmatprep.mubr.f32.mxu0 0.0
    %333 = vmatmul.mubr.f32.gmra.mrb[0].mxu0 %v232
    %v334 = vpop.f32.mrb[0].mxu0
    %v335 = vadd.f32 %v266, %v334
    %v336 = vpop.f32.mrb[0].mxu0
    %337 = vmatprep.mubr.f32.mxu0 0.0
    %338 = vmatmul.mubr.f32.gmra.mrb[0].mxu0 %v233
    %v339 = vpop.f32.mrb[0].mxu0
    %v340 = vadd.f32 %v266, %v339
    %v341 = vpop.f32.mrb[0].mxu0
    %342 = vmatprep.mubr.f32.mxu0 0.0
    %343 = vmatmul.mubr.f32.gmra.mrb[0].mxu0 %v234
    %v344 = vpop.f32.mrb[0].mxu0
    %v345 = vadd.f32 %v266, %v344
    %v346 = vpop.f32.mrb[0].mxu0
    %347 = vmatprep.mubr.f32.mxu0 0.0
    %348 = vmatmul.mubr.f32.gmra.mrb[0].mxu0 %v235
    %v349 = vpop.f32.mrb[0].mxu0
    %v350 = vadd.f32 %v266, %v349
    %v351 = vpop.f32.mrb[0].mxu0
    %352 = vmatprep.mubr.f32.mxu0 0.0
    %353 = vmatmul.mubr.f32.gmra.mrb[0].mxu0 %v236
    %v354 = vpop.f32.mrb[0].mxu0
    %v355 = vadd.f32 %v266, %v354
    %v356 = vpop.f32.mrb[0].mxu0
    %357 = vmatprep.mubr.f32.mxu0 0.0
    %358 = vmatmul.mubr.f32.gmra.mrb[0].mxu0 %v237
    %v359 = vpop.f32.mrb[0].mxu0
    %v360 = vadd.f32 %v266, %v359
    %v361 = vpop.f32.mrb[0].mxu0
    %362 = vmatprep.mubr.f32.mxu0 0.0
    %363 = vmatmul.mubr.f32.gmra.mrb[0].mxu0 %v238
    %v364 = vpop.f32.mrb[0].mxu0
    %v365 = vadd.f32 %v266, %v364
    %v366 = vpop.f32.mrb[0].mxu0
    %367 = vmatprep.mubr.f32.mxu0 0.0
    %368 = vmatmul.mubr.f32.gmra.mrb[0].mxu0 %v239
    %v369 = vpop.f32.mrb[0].mxu0
    %v370 = vadd.f32 %v266, %v369
    %v371 = vpop.f32.mrb[0].mxu0
    %372 = vmatprep.mubr.f32.mxu0 0.0
    %373 = vmatmul.mubr.f32.gmra.mrb[0].mxu0 %v240
    %v374 = vpop.f32.mrb[0].mxu0
    %v375 = vadd.f32 %v266, %v374
    %v376 = vpop.f32.mrb[0].mxu0
    %377 = vmatprep.mubr.f32.mxu0 0.0
    %378 = vmatmul.mubr.f32.gmra.mrb[0].mxu0 %v241
    %v379 = vpop.f32.mrb[0].mxu0
    %v380 = vadd.f32 %v266, %v379
    %v381 = vpop.f32.mrb[0].mxu0
    %382 = vmatprep.mubr.f32.mxu0 0.0
    %383 = vmatmul.mubr.f32.gmra.mrb[0].mxu0 %v242
    %v384 = vpop.f32.mrb[0].mxu0
    %v385 = vadd.f32 %v266, %v384
    %v386 = vpop.f32.mrb[0].mxu0
    %387 = vmatprep.mubr.f32.mxu0 0.0
    %388 = vmatmul.mubr.f32.gmra.mrb[0].mxu0 %v243
    %v389 = vpop.f32.mrb[0].mxu0
    %v390 = vadd.f32 %v266, %v389
    %v391 = vpop.f32.mrb[0].mxu0
    %392 = vmatprep.mubr.f32.mxu0 0.0
    %393 = vmatmul.mubr.f32.gmra.mrb[0].mxu0 %v244
    %v394 = vpop.f32.mrb[0].mxu0
    %v395 = vadd.f32 %v266, %v394
    %v396 = vpop.f32.mrb[0].mxu0
    %397 = vdwg.mxu0
    %vm398 = vcmask 15360
    %399 = vst.msk [vmem:[%s5] sm:$0xff] %vm398, %v335
    %400 = vst.msk [vmem:[%s5 + $0x8] sm:$0xff] %vm398, %v340
    %401 = vst.msk [vmem:[%s5 + $0x10] sm:$0xff] %vm398, %v345
    %402 = vst.msk [vmem:[%s5 + $0x18] sm:$0xff] %vm398, %v350
    %403 = vst.msk [vmem:[%s5 + $0x20] sm:$0xff] %vm398, %v355
    %404 = vst.msk [vmem:[%s5 + $0x28] sm:$0xff] %vm398, %v360
    %405 = vst.msk [vmem:[%s5 + $0x30] sm:$0xff] %vm398, %v365
    %406 = vst.msk [vmem:[%s5 + $0x38] sm:$0xff] %vm398, %v370
    %407 = vst.msk [vmem:[%s5 + $0x40] sm:$0xff] %vm398, %v375
    %408 = vst.msk [vmem:[%s5 + $0x48] sm:$0xff] %vm398, %v380
    %409 = vst.msk [vmem:[%s5 + $0x50] sm:$0xff] %vm398, %v385
    %410 = vst.msk [vmem:[%s5 + $0x58] sm:$0xff] %vm398, %v390
    %411 = vst.msk [vmem:[%s5 + $0x60] sm:$0xff] %vm398, %v395
    // Predicated region
    $region26: #{tpu_custom_call.1} parent=1 // pred_check
      _
    $region27: #{tpu_custom_call.1} parent=1 // pred_check_branch
      %413 = sbr.rel (0) target = $region29
    $region28: #{tpu_custom_call.1} parent=1 // pred_region
      _
    $region29: #{tpu_custom_call.1} parent=1 // pred_fallthru
      _
    // Predicated region
    $region30: #{tpu_custom_call.1} parent=1 // pred_check
      _
    $region31: #{tpu_custom_call.1} parent=1 // pred_check_branch
      %415 = sbr.rel (0) target = $region33
    $region32: #{tpu_custom_call.1} parent=1 // pred_region
      _
    $region33: #{tpu_custom_call.1} parent=1 // pred_fallthru
      _
    %416 = vsyncpa [#allocation3], 1

</llo_original>
